<compile_context>
chip_gen: v6e
topology: v6e:2x2x1
jax: 0.10.0
libtpu: 0.0.40
codegen_flags: <defaults>
</compile_context>

<pallas_src>
import functools

import jax
import jax.numpy as jnp
from jax.experimental import pallas as pl
from jax.experimental.pallas import tpu as pltpu

# Crop sizes from the PyTorch module.
TRIM_H = 216
TRIM_W = 288


def _round_up(x: int, m: int) -> int:
    return ((x + m - 1) // m) * m


def _sublane_tile(dtype) -> int:
    # 32-bit -> 8 rows, 16-bit -> 16 rows, 8-bit -> 32 rows per sublane tile.
    return max(1, 32 // jnp.dtype(dtype).itemsize)


def _vmem_capacity_bytes() -> int:
    """Physical VMEM per TensorCore; conservative fallback if unqueryable."""
    try:
        cap = getattr(pltpu.get_tpu_info(), "vmem_capacity_bytes", None)
        if cap:
            return int(cap)
    except Exception:
        pass
    return 64 << 20  # v7x per-core size: safe lower bound for all generations


def _trim_kernel(x_ref, o_ref, *, h_keep, w_keep):
    # x_ref: (B, h_in_chunk, W) VMEM tile;  o_ref: (B, h_keep, w_keep)
    o_ref[...] = x_ref[:, :h_keep, :w_keep]


def trim(x: jax.Array) -> jax.Array:
    """Equivalent of Trim().forward(x) for an NCHW array."""
    N, C, H, W = x.shape
    # PyTorch slicing semantics: `:216` on a smaller dim keeps the whole dim.
    h_out = min(TRIM_H, H)
    w_out = min(TRIM_W, W)

    # No-op crop: never launch a copy kernel.
    if h_out == H and w_out == W:
        return x

    NC = N * C
    itemsize = jnp.dtype(x.dtype).itemsize
    sub = _sublane_tile(x.dtype)

    # Input rows per plane actually read from HBM.  Legal block H dims are
    # multiples of the sublane tile or the full array dim.
    if h_out == H or h_out % sub == 0:
        h_in_block = h_out
    else:
        h_in_block = min(H, _round_up(h_out, sub))
    crop_h_in_kernel = h_in_block != h_out

    # Chip-dependent sizing: ~37.5% of physical VMEM for the double-buffered
    # in+out blocks (48 MiB on v5e/v6e's 128 MiB, 24 MiB on v7x's 64 MiB).
    vmem_cap = _vmem_capacity_bytes()
    two_cores = vmem_cap < (100 << 20)  # 64 MiB/TC => v7x (2 TensorCores)
    budget = (3 * vmem_cap) // 8

    bytes_in_plane = h_in_block * W * itemsize
    bytes_out_plane = h_out * w_out * itemsize
    pair = bytes_in_plane + bytes_out_plane

    # Largest B that fits the budget; only 2-TC chips need >= 2 grid steps.
    b_cap = NC
    if two_cores and NC >= 2:
        b_cap = (NC + 1) // 2
    B = max(1, min(b_cap, budget // (2 * pair)))
    plane_steps = (NC + B - 1) // B

    # On 2-TC chips with a single plane step, split H into sublane-aligned
    # chunks so both cores get work (harmless elsewhere; path only taken when
    # the crop is fully expressible in the BlockSpec).
    h_steps = 1
    h_in_chunk = h_in_block
    h_out_chunk = h_out
    if (two_cores and plane_steps == 1 and not crop_h_in_kernel
            and h_out % sub == 0 and h_out >= 2 * sub):
        h_out_chunk = _round_up(-(-h_out // 2), sub)
        h_in_chunk = h_out_chunk
        h_steps = -(-h_out // h_out_chunk)

    # Scoped VMEM limit sized to the chosen blocks (plus headroom), clamped
    # below physical capacity.
    required = 2 * B * (h_in_chunk * W + h_out_chunk * w_out) * itemsize
    vmem_limit = int(min(vmem_cap - (8 << 20),
                         max(required + (4 << 20), 32 << 20)))
    vmem_limit = max(vmem_limit, 16 << 20)

    # Free reshape: NCHW is contiguous, (N, C, H, W) -> (N*C, H, W).
    x_flat = x.reshape(NC, H, W)

    kernel = functools.partial(_trim_kernel, h_keep=h_out_chunk, w_keep=w_out)

    out_flat = pl.pallas_call(
        kernel,
        out_shape=jax.ShapeDtypeStruct((NC, h_out, w_out), x.dtype),
        grid=(plane_steps, h_steps),
        in_specs=[
            # Only the kept (rounded-up) rows are DMA'd; full W rows so the
            # last block dim equals the full array dim (BlockSpec-legal).
            pl.BlockSpec((B, h_in_chunk, W), lambda i, j: (i, j, 0)),
        ],
        out_specs=pl.BlockSpec((B, h_out_chunk, w_out), lambda i, j: (i, j, 0)),
        compiler_params=pltpu.CompilerParams(
            dimension_semantics=("parallel", "parallel"),
            vmem_limit_bytes=vmem_limit,
        ),
    )(x_flat)

    return out_flat.reshape(N, C, h_out, w_out)


if __name__ == "__main__":
    key = jax.random.PRNGKey(0)

    # Main case: real crop on both H and W (f32 -> sublane-aligned H crop).
    x = jax.random.normal(key, (2, 4, 224, 320), dtype=jnp.float32)
    out = trim(x)
    jax.block_until_ready(out)
    expected = x[:, :, :TRIM_H, :TRIM_W]
    assert out.shape == (2, 4, TRIM_H, TRIM_W), out.shape
    assert out.dtype == x.dtype
    assert bool(jnp.array_equal(out, expected))

    # Packed dtype: 216 not a multiple of 16 -> rounded-up input block +
    # in-kernel H slice; NC=3 exercises the cdiv (partial last block) path.
    xb = jax.random.normal(key, (1, 3, 230, 300), dtype=jnp.bfloat16)
    outb = trim(xb)
    jax.block_until_ready(outb)
    assert outb.shape == (1, 3, TRIM_H, TRIM_W), outb.shape
    assert outb.dtype == xb.dtype
    assert bool(jnp.array_equal(outb, xb[:, :, :TRIM_H, :TRIM_W]))

    # Single plane: exercises the optional H-split grid axis on 2-TC chips.
    x1 = jax.random.normal(key, (1, 1, 224, 320), dtype=jnp.float32)
    out1 = trim(x1)
    jax.block_until_ready(out1)
    assert out1.shape == (1, 1, TRIM_H, TRIM_W), out1.shape
    assert bool(jnp.array_equal(out1, x1[:, :, :TRIM_H, :TRIM_W]))

    # Smaller-than-crop input: PyTorch keeps whole dims -> early return, no kernel.
    xs = jax.random.normal(key, (1, 2, 16, 32), dtype=jnp.float32)
    outs = trim(xs)
    jax.block_until_ready(outs)
    assert outs.shape == (1, 2, 16, 32), outs.shape
    assert bool(jnp.array_equal(outs, xs))

    print("KERNEL_OK")
</pallas_src>

<mosaic_0001>
module attributes {stable_mosaic.version = 11 : i64} {
  func.func @_trim_kernel(%arg0: i32, %arg1: i32, %arg2: memref<4x216x320xf32, #tpu.memory_space<vmem>>, %arg3: memref<4x216x288xf32, #tpu.memory_space<vmem>>) attributes {dimension_semantics = [#tpu.dimension_semantics<parallel>, #tpu.dimension_semantics<parallel>], iteration_bounds = array<i64: 2, 1>, scalar_prefetch = 0 : i64, scratch_operands = 0 : i64, tpu.core_type = #tpu.core_type<tc>, window_params = [{transform_indices = @transform_0, window_bounds = array<i64: 4, 216, 320>}, {transform_indices = @transform_1, window_bounds = array<i64: 4, 216, 288>}]} {
    %c0 = arith.constant 0 : index
    %c0_0 = arith.constant 0 : index
    %c0_1 = arith.constant 0 : index
    %0 = vector.load %arg2[%c0, %c0_0, %c0_1] : memref<4x216x320xf32, #tpu.memory_space<vmem>>, vector<4x216x288xf32>
    %c0_2 = arith.constant 0 : index
    %c0_3 = arith.constant 0 : index
    %c0_4 = arith.constant 0 : index
    %1 = vector.load %arg3[%c0_2, %c0_3, %c0_4] : memref<4x216x288xf32, #tpu.memory_space<vmem>>, vector<4x216x288xf32>
    tpu.vector_store %arg3[%c0_2, %c0_3, %c0_4], %0 {strides = array<i32>} : memref<4x216x288xf32, #tpu.memory_space<vmem>>, vector<4x216x288xf32>,
    return
  }
  func.func @transform_0(%arg0: i32, %arg1: i32) -> (i32, i32, i32) {
    %c0_i32 = arith.constant 0 : i32
    %c0_i32_0 = arith.constant 0 : i32
    return %arg0, %arg1, %c0_i32 : i32, i32, i32
  }
  func.func @transform_1(%arg0: i32, %arg1: i32) -> (i32, i32, i32) {
    %c0_i32 = arith.constant 0 : i32
    %c0_i32_0 = arith.constant 0 : i32
    return %arg0, %arg1, %c0_i32 : i32, i32, i32
  }
}

</mosaic_0001>

<llo_original>
// kernel: tpu_custom_call.1
$region0: #{tpu_custom_call.1}
  #allocation0 [shape = 'u32[]', space=smem, size = 0x4, offset = 0x4, fixed_abs, tag = 'smem constant byte address 0x4 - core index']
  #allocation1 [shape = 'u32[144,128]{1,0:T(1,128)}', space=vmem, size = 0x12000, scoped, tag = 'internal scratch']
  %s0 = inlined_call_operand.vmem [shape: f32[8,224,320], index: 0, kind: input, shape index: {}]
  %s1 = inlined_call_operand.vmem [shape: f32[8,216,288], index: 1, kind: output, shape index: {}]
  %s2 = sld [smem:[#allocation0]]
  $region67: #{tpu_custom_call.1} parent=0
    _
  %s4 = ssub.s32 1, %s2
  %s5 = scalar_select 0, %s4, %s2
  $region1: #{tpu_custom_call.1} parent=0
    #allocation2 [shape = 'u8[2654208]{0}', space=vmem, size = 0x288000, scoped, tag = 'input window, operand 0']
    loop: start=0, step=1, limit=4
    $region2: #{tpu_custom_call.1} parent=1 // loop_pre_header
      _
    $region3: #{tpu_custom_call.1} parent=1 // loop_header
      %s7 = sphi 0, %s11
      %p8 = scmp.ge.s32.totalorder %s7, 4
      %s14 = sphi 0, %s26
      %s15 = sphi 0, %s22
      %s16 = sphi 0, %s14
      %s17 = sphi 0, %s15
      %s18 = sphi 0, %s16
      %s19 = sphi 0, %s17
      %s31 = sphi 0, %s33
      %s34 = sphi 0, %s31
      %s35 = sphi 0, %s34
      %s51 = sphi 0, %s35
      %s59 = sphi 0, %s61
      %s62 = sphi 0, %s59
      %s63 = sphi 0, %s62
      %s79 = sphi 0, %s63
    $region4: #{tpu_custom_call.1} parent=1 // loop_header_branch
      %10 = sbr.rel (%p8) target = $region8
    $region5: #{tpu_custom_call.1} parent=1 // loop_body
      %s12 = ssub.s32 %s7, 1
      %s13 = ssub.s32 %s7, 2
      %s20 = sadd.s32 1, %s15
      %p21 = scmp.ge.s32.totalorder %s20, 1
      %s22 = scalar_select %p21, 0, %s20
      %s23 = sadd.s32 1, %s14
      %s24 = scalar_select %p21, %s23, %s14
      %p25 = scmp.ge.s32.totalorder %s24, 2
      %s26 = scalar_select %p25, 0, %s24
      %s27 = ssub.s32 %s14, %s26
      %s28 = ssub.s32 %s15, %s22
      %s29 = sor.u32 %s27, %s28
      %p30 = scmp.eq.s32.totalorder %s29, 0
      %s32 = sadd.s32 %s31, 1
      %s33 = scalar_select %p30, %s31, %s32
      %p36 = pneg %p30
      %p37 = scmp.eq.s32.totalorder %s7, 1
      %p38 = por %p36, %p37
      %p39 = scmp.ne.s32.totalorder %s31, %s34
      %p40 = scmp.eq.s32.totalorder %s7, 0
      %p41 = por %p39, %p40
      %p42 = scmp.ne.s32.totalorder %s31, %s34
      %p43 = scmp.eq.s32.totalorder %s12, 1
      %p44 = por %p42, %p43
      %p45 = scmp.ne.s32.totalorder %s34, %s35
      %p46 = scmp.eq.s32.totalorder %s12, 0
      %p47 = por %p45, %p46
      %p48 = scmp.ne.s32.totalorder %s34, %s35
      %p49 = scmp.eq.s32.totalorder %s13, 1
      %p50 = por %p48, %p49
      %p52 = scmp.ne.s32.totalorder %s35, %s51
      %p53 = scmp.eq.s32.totalorder %s13, 0
      %p54 = por %p52, %p53
      %s55 = ssub.s32 %s14, %s26
      %s56 = ssub.s32 %s15, %s22
      %s57 = sor.u32 %s55, %s56
      %p58 = scmp.eq.s32.totalorder %s57, 0
      %s60 = sadd.s32 %s59, 1
      %s61 = scalar_select %p58, %s59, %s60
      %p64 = pneg %p58
      %p65 = scmp.eq.s32.totalorder %s7, 1
      %p66 = por %p64, %p65
      %p67 = scmp.ne.s32.totalorder %s59, %s62
      %p68 = scmp.eq.s32.totalorder %s7, 0
      %p69 = por %p67, %p68
      %p70 = scmp.ne.s32.totalorder %s59, %s62
      %p71 = scmp.eq.s32.totalorder %s12, 1
      %p72 = por %p70, %p71
      %p73 = scmp.ne.s32.totalorder %s62, %s63
      %p74 = scmp.eq.s32.totalorder %s12, 0
      %p75 = por %p73, %p74
      %p76 = scmp.ne.s32.totalorder %s62, %s63
      %p77 = scmp.eq.s32.totalorder %s13, 1
      %p78 = por %p76, %p77
      %p80 = scmp.ne.s32.totalorder %s63, %s79
      %p81 = scmp.eq.s32.totalorder %s13, 0
      %p82 = por %p80, %p81
      %p83 = scmp.le.s32.totalorder 1, %s7
      %p84 = scmp.lt.s32.totalorder %s7, 3
      %p85 = pnand %p83, %p84
      %p86 = pneg %p85
      // Predicated region
      $region9: #{tpu_custom_call.1} parent=5 // pred_check
        _
      $region10: #{tpu_custom_call.1} parent=5 // pred_check_branch
        %88 = sbr.rel (%p85) target = $region12
      $region11: #{tpu_custom_call.1} parent=5 // pred_region
        %s89 = ssub.s32 %s7, 1
      $region12: #{tpu_custom_call.1} parent=5 // pred_fallthru
        _
      %p90 = scmp.lt.s32.totalorder %s7, 2
      // Predicated region
      $region13: #{tpu_custom_call.1} parent=5 // pred_check
        %p91 = pneg %p90
      $region14: #{tpu_custom_call.1} parent=5 // pred_check_branch
        %93 = sbr.rel (%p91) target = $region16
      $region15: #{tpu_custom_call.1} parent=5 // pred_region
        // Predicated region
        $region17: #{tpu_custom_call.1} parent=15 // pred_check
          %p94 = pneg %p41
        $region18: #{tpu_custom_call.1} parent=15 // pred_check_branch
          %96 = sbr.rel (%p94) target = $region20
        $region19: #{tpu_custom_call.1} parent=15 // pred_region
          %s97 = sand.u32 %s31, 1
          %s98 = sand.u32 %s31, 1
          %s99 = smul.addr %s98, 2592
          %s100 = scalar_lea.vmem [#allocation2], %s99
          %s101 = smul.u32 4, %s14
          %s102 = smul.u32 27, %s15
          %s103 = ssub.s32 28, %s102
          %p104 = scmp.lt.s32.totalorder %s103, 27
          %s105 = scalar_select %p104, %s103, 27
          %s106 = smul.u32 512, %s105
          %s107 = smul.u32 %s106, 3
          %p108 = scmp.ne.s32.totalorder 0, %s107
          %s109 = smul.addr %s102, 3
          %s110 = smul.addr %s101, 84
          %s111 = sadd.s32 %s109, %s110
          %s112 = smul.addr %s111, 8
          %s113 = scalar_lea.vmem %s0, %s112
          // Predicated region
          $region21: #{tpu_custom_call.1} parent=19 // pred_check
            %p114 = pneg %p108
          $region22: #{tpu_custom_call.1} parent=19 // pred_check_branch
            %116 = sbr.rel (%p114) target = $region24
          $region23: #{tpu_custom_call.1} parent=19 // pred_region
            // Predicated region
            $region25: #{tpu_custom_call.1} parent=23 // pred_check
              _
            $region26: #{tpu_custom_call.1} parent=23 // pred_check_branch
              %118 = sbr.rel (0) target = $region28
            $region27: #{tpu_custom_call.1} parent=23 // pred_region
              %s119 = sdiv.u32.pop %s105, 6
              %s120 = srem.u32.pop %s105, 6
              // While loop
              $region29: #{tpu_custom_call.1} parent=27 // loop_pre_header
                _
              $region30: #{tpu_custom_call.1} parent=27 // loop_header
                %s122 = sphi 0, %s124
                %p123 = scmp.ge.s32.totalorder %s122, %s119
                %s127 = sphi 0, %s276
                %s128 = sphi %s113, %s279
                %s129 = sphi %s100, %s280
              $region31: #{tpu_custom_call.1} parent=27 // loop_header_branch
                %126 = sbr.rel (%p123) target = $region35
              $region32: #{tpu_custom_call.1} parent=27 // loop_body
                %v130 = vld [vmem:[%s128] sm:$0xff]
                %131 = vst [vmem:[%s129] sm:$0xff] %v130
                %v132 = vld [vmem:[%s128 + $0x18] sm:$0xff]
                %133 = vst [vmem:[%s129 + $0x18] sm:$0xff] %v132
                %v134 = vld [vmem:[%s128 + $0x30] sm:$0xff]
                %135 = vst [vmem:[%s129 + $0x30] sm:$0xff] %v134
                %v136 = vld [vmem:[%s128 + $0x48] sm:$0xff]
                %137 = vst [vmem:[%s129 + $0x48] sm:$0xff] %v136
                %v138 = vld [vmem:[%s128 + $0x60] sm:$0xff]
                %139 = vst [vmem:[%s129 + $0x60] sm:$0xff] %v138
                %v140 = vld [vmem:[%s128 + $0x78] sm:$0xff]
                %141 = vst [vmem:[%s129 + $0x78] sm:$0xff] %v140
                %v142 = vld [vmem:[%s128 + $0x8] sm:$0xff]
                %143 = vst [vmem:[%s129 + $0x8] sm:$0xff] %v142
                %v144 = vld [vmem:[%s128 + $0x20] sm:$0xff]
                %145 = vst [vmem:[%s129 + $0x20] sm:$0xff] %v144
                %v146 = vld [vmem:[%s128 + $0x38] sm:$0xff]
                %147 = vst [vmem:[%s129 + $0x38] sm:$0xff] %v146
                %v148 = vld [vmem:[%s128 + $0x50] sm:$0xff]
                %149 = vst [vmem:[%s129 + $0x50] sm:$0xff] %v148
                %v150 = vld [vmem:[%s128 + $0x68] sm:$0xff]
                %151 = vst [vmem:[%s129 + $0x68] sm:$0xff] %v150
                %v152 = vld [vmem:[%s128 + $0x80] sm:$0xff]
                %153 = vst [vmem:[%s129 + $0x80] sm:$0xff] %v152
                %v154 = vld [vmem:[%s128 + $0x10] sm:$0xff]
                %155 = vst [vmem:[%s129 + $0x10] sm:$0xff] %v154
                %v156 = vld [vmem:[%s128 + $0x28] sm:$0xff]
                %157 = vst [vmem:[%s129 + $0x28] sm:$0xff] %v156
                %v158 = vld [vmem:[%s128 + $0x40] sm:$0xff]
                %159 = vst [vmem:[%s129 + $0x40] sm:$0xff] %v158
                %v160 = vld [vmem:[%s128 + $0x58] sm:$0xff]
                %161 = vst [vmem:[%s129 + $0x58] sm:$0xff] %v160
                %v162 = vld [vmem:[%s128 + $0x70] sm:$0xff]
                %163 = vst [vmem:[%s129 + $0x70] sm:$0xff] %v162
                %v164 = vld [vmem:[%s128 + $0x88] sm:$0xff]
                %165 = vst [vmem:[%s129 + $0x88] sm:$0xff] %v164
                %v166 = vld [vmem:[%s128 + $0x2a0] sm:$0xff]
                %167 = vst [vmem:[%s129 + $0x288] sm:$0xff] %v166
                %v168 = vld [vmem:[%s128 + $0x2b8] sm:$0xff]
                %169 = vst [vmem:[%s129 + $0x2a0] sm:$0xff] %v168
                %v170 = vld [vmem:[%s128 + $0x2d0] sm:$0xff]
                %171 = vst [vmem:[%s129 + $0x2b8] sm:$0xff] %v170
                %v172 = vld [vmem:[%s128 + $0x2e8] sm:$0xff]
                %173 = vst [vmem:[%s129 + $0x2d0] sm:$0xff] %v172
                %v174 = vld [vmem:[%s128 + $0x300] sm:$0xff]
                %175 = vst [vmem:[%s129 + $0x2e8] sm:$0xff] %v174
                %v176 = vld [vmem:[%s128 + $0x318] sm:$0xff]
                %177 = vst [vmem:[%s129 + $0x300] sm:$0xff] %v176
                %v178 = vld [vmem:[%s128 + $0x2a8] sm:$0xff]
                %179 = vst [vmem:[%s129 + $0x290] sm:$0xff] %v178
                %v180 = vld [vmem:[%s128 + $0x2c0] sm:$0xff]
                %181 = vst [vmem:[%s129 + $0x2a8] sm:$0xff] %v180
                %v182 = vld [vmem:[%s128 + $0x2d8] sm:$0xff]
                %183 = vst [vmem:[%s129 + $0x2c0] sm:$0xff] %v182
                %v184 = vld [vmem:[%s128 + $0x2f0] sm:$0xff]
                %185 = vst [vmem:[%s129 + $0x2d8] sm:$0xff] %v184
                %v186 = vld [vmem:[%s128 + $0x308] sm:$0xff]
                %187 = vst [vmem:[%s129 + $0x2f0] sm:$0xff] %v186
                %v188 = vld [vmem:[%s128 + $0x320] sm:$0xff]
                %189 = vst [vmem:[%s129 + $0x308] sm:$0xff] %v188
                %v190 = vld [vmem:[%s128 + $0x2b0] sm:$0xff]
                %191 = vst [vmem:[%s129 + $0x298] sm:$0xff] %v190
                %v192 = vld [vmem:[%s128 + $0x2c8] sm:$0xff]
                %193 = vst [vmem:[%s129 + $0x2b0] sm:$0xff] %v192
                %v194 = vld [vmem:[%s128 + $0x2e0] sm:$0xff]
                %195 = vst [vmem:[%s129 + $0x2c8] sm:$0xff] %v194
                %v196 = vld [vmem:[%s128 + $0x2f8] sm:$0xff]
                %197 = vst [vmem:[%s129 + $0x2e0] sm:$0xff] %v196
                %v198 = vld [vmem:[%s128 + $0x310] sm:$0xff]
                %199 = vst [vmem:[%s129 + $0x2f8] sm:$0xff] %v198
                %v200 = vld [vmem:[%s128 + $0x328] sm:$0xff]
                %201 = vst [vmem:[%s129 + $0x310] sm:$0xff] %v200
                %v202 = vld [vmem:[%s128 + $0x540] sm:$0xff]
                %203 = vst [vmem:[%s129 + $0x510] sm:$0xff] %v202
                %v204 = vld [vmem:[%s128 + $0x558] sm:$0xff]
                %205 = vst [vmem:[%s129 + $0x528] sm:$0xff] %v204
                %v206 = vld [vmem:[%s128 + $0x570] sm:$0xff]
                %207 = vst [vmem:[%s129 + $0x540] sm:$0xff] %v206
                %v208 = vld [vmem:[%s128 + $0x588] sm:$0xff]
                %209 = vst [vmem:[%s129 + $0x558] sm:$0xff] %v208
                %v210 = vld [vmem:[%s128 + $0x5a0] sm:$0xff]
                %211 = vst [vmem:[%s129 + $0x570] sm:$0xff] %v210
                %v212 = vld [vmem:[%s128 + $0x5b8] sm:$0xff]
                %213 = vst [vmem:[%s129 + $0x588] sm:$0xff] %v212
                %v214 = vld [vmem:[%s128 + $0x548] sm:$0xff]
                %215 = vst [vmem:[%s129 + $0x518] sm:$0xff] %v214
                %v216 = vld [vmem:[%s128 + $0x560] sm:$0xff]
                %217 = vst [vmem:[%s129 + $0x530] sm:$0xff] %v216
                %v218 = vld [vmem:[%s128 + $0x578] sm:$0xff]
                %219 = vst [vmem:[%s129 + $0x548] sm:$0xff] %v218
                %v220 = vld [vmem:[%s128 + $0x590] sm:$0xff]
                %221 = vst [vmem:[%s129 + $0x560] sm:$0xff] %v220
                %v222 = vld [vmem:[%s128 + $0x5a8] sm:$0xff]
                %223 = vst [vmem:[%s129 + $0x578] sm:$0xff] %v222
                %v224 = vld [vmem:[%s128 + $0x5c0] sm:$0xff]
                %225 = vst [vmem:[%s129 + $0x590] sm:$0xff] %v224
                %v226 = vld [vmem:[%s128 + $0x550] sm:$0xff]
                %227 = vst [vmem:[%s129 + $0x520] sm:$0xff] %v226
                %v228 = vld [vmem:[%s128 + $0x568] sm:$0xff]
                %229 = vst [vmem:[%s129 + $0x538] sm:$0xff] %v228
                %v230 = vld [vmem:[%s128 + $0x580] sm:$0xff]
                %231 = vst [vmem:[%s129 + $0x550] sm:$0xff] %v230
                %v232 = vld [vmem:[%s128 + $0x598] sm:$0xff]
                %233 = vst [vmem:[%s129 + $0x568] sm:$0xff] %v232
                %v234 = vld [vmem:[%s128 + $0x5b0] sm:$0xff]
                %235 = vst [vmem:[%s129 + $0x580] sm:$0xff] %v234
                %v236 = vld [vmem:[%s128 + $0x5c8] sm:$0xff]
                %237 = vst [vmem:[%s129 + $0x598] sm:$0xff] %v236
                %v238 = vld [vmem:[%s128 + $0x7e0] sm:$0xff]
                %239 = vst [vmem:[%s129 + $0x798] sm:$0xff] %v238
                %v240 = vld [vmem:[%s128 + $0x7f8] sm:$0xff]
                %241 = vst [vmem:[%s129 + $0x7b0] sm:$0xff] %v240
                %v242 = vld [vmem:[%s128 + $0x810] sm:$0xff]
                %243 = vst [vmem:[%s129 + $0x7c8] sm:$0xff] %v242
                %v244 = vld [vmem:[%s128 + $0x828] sm:$0xff]
                %245 = vst [vmem:[%s129 + $0x7e0] sm:$0xff] %v244
                %v246 = vld [vmem:[%s128 + $0x840] sm:$0xff]
                %247 = vst [vmem:[%s129 + $0x7f8] sm:$0xff] %v246
                %v248 = vld [vmem:[%s128 + $0x858] sm:$0xff]
                %249 = vst [vmem:[%s129 + $0x810] sm:$0xff] %v248
                %v250 = vld [vmem:[%s128 + $0x7e8] sm:$0xff]
                %251 = vst [vmem:[%s129 + $0x7a0] sm:$0xff] %v250
                %v252 = vld [vmem:[%s128 + $0x800] sm:$0xff]
                %253 = vst [vmem:[%s129 + $0x7b8] sm:$0xff] %v252
                %v254 = vld [vmem:[%s128 + $0x818] sm:$0xff]
                %255 = vst [vmem:[%s129 + $0x7d0] sm:$0xff] %v254
                %v256 = vld [vmem:[%s128 + $0x830] sm:$0xff]
                %257 = vst [vmem:[%s129 + $0x7e8] sm:$0xff] %v256
                %v258 = vld [vmem:[%s128 + $0x848] sm:$0xff]
                %259 = vst [vmem:[%s129 + $0x800] sm:$0xff] %v258
                %v260 = vld [vmem:[%s128 + $0x860] sm:$0xff]
                %261 = vst [vmem:[%s129 + $0x818] sm:$0xff] %v260
                %v262 = vld [vmem:[%s128 + $0x7f0] sm:$0xff]
                %263 = vst [vmem:[%s129 + $0x7a8] sm:$0xff] %v262
                %v264 = vld [vmem:[%s128 + $0x808] sm:$0xff]
                %265 = vst [vmem:[%s129 + $0x7c0] sm:$0xff] %v264
                %v266 = vld [vmem:[%s128 + $0x820] sm:$0xff]
                %267 = vst [vmem:[%s129 + $0x7d8] sm:$0xff] %v266
                %v268 = vld [vmem:[%s128 + $0x838] sm:$0xff]
                %269 = vst [vmem:[%s129 + $0x7f0] sm:$0xff] %v268
                %v270 = vld [vmem:[%s128 + $0x850] sm:$0xff]
                %271 = vst [vmem:[%s129 + $0x808] sm:$0xff] %v270
                %v272 = vld [vmem:[%s128 + $0x868] sm:$0xff]
                %273 = vst [vmem:[%s129 + $0x820] sm:$0xff] %v272
                %s274 = sadd.s32 1, %s127
                %p275 = scmp.ge.s32.totalorder %s274, %s119
                %s276 = scalar_select %p275, 0, %s274
                %s277 = smul.u32 %s276, 144
                %s278 = smul.u32 %s276, 144
                %s279 = scalar_lea.vmem %s113, %s277
                %s280 = scalar_lea.vmem %s100, %s278 [#allocation2]
              $region33: #{tpu_custom_call.1} parent=27 // loop_footer
                %s124 = sadd.s32 %s122, 1
              $region34: #{tpu_custom_call.1} parent=27 // loop_footer_branch
                %121 = sbr.rel target = $region30
              $region35: #{tpu_custom_call.1} parent=27 // loop_exit
                _
              %s281 = sdiv.u32.pop %s105, 6
              %s282 = srem.u32.pop %s105, 6
              %s283 = smul.u32 %s281, 6
              %s284 = smul.u32 24, %s283
              %s285 = scalar_lea.vmem %s113, %s284
              %s286 = smul.u32 24, %s283
              %s287 = scalar_lea.vmem %s100, %s286 [#allocation2]
              // While loop
              $region36: #{tpu_custom_call.1} parent=27 // loop_pre_header
                _
              $region37: #{tpu_custom_call.1} parent=27 // loop_header
                %s289 = sphi 0, %s291
                %p290 = scmp.ge.s32.totalorder %s289, %s282
                %s294 = sphi 0, %s323
                %s295 = sphi %s285, %s326
                %s296 = sphi %s287, %s327
              $region38: #{tpu_custom_call.1} parent=27 // loop_header_branch
                %293 = sbr.rel (%p290) target = $region42
              $region39: #{tpu_custom_call.1} parent=27 // loop_body
                %v297 = vld [vmem:[%s295] sm:$0xff]
                %298 = vst [vmem:[%s296] sm:$0xff] %v297
                %v299 = vld [vmem:[%s295 + $0x8] sm:$0xff]
                %300 = vst [vmem:[%s296 + $0x8] sm:$0xff] %v299
                %v301 = vld [vmem:[%s295 + $0x10] sm:$0xff]
                %302 = vst [vmem:[%s296 + $0x10] sm:$0xff] %v301
                %v303 = vld [vmem:[%s295 + $0x2a0] sm:$0xff]
                %304 = vst [vmem:[%s296 + $0x288] sm:$0xff] %v303
                %v305 = vld [vmem:[%s295 + $0x2a8] sm:$0xff]
                %306 = vst [vmem:[%s296 + $0x290] sm:$0xff] %v305
                %v307 = vld [vmem:[%s295 + $0x2b0] sm:$0xff]
                %308 = vst [vmem:[%s296 + $0x298] sm:$0xff] %v307
                %v309 = vld [vmem:[%s295 + $0x540] sm:$0xff]
                %310 = vst [vmem:[%s296 + $0x510] sm:$0xff] %v309
                %v311 = vld [vmem:[%s295 + $0x548] sm:$0xff]
                %312 = vst [vmem:[%s296 + $0x518] sm:$0xff] %v311
                %v313 = vld [vmem:[%s295 + $0x550] sm:$0xff]
                %314 = vst [vmem:[%s296 + $0x520] sm:$0xff] %v313
                %v315 = vld [vmem:[%s295 + $0x7e0] sm:$0xff]
                %316 = vst [vmem:[%s296 + $0x798] sm:$0xff] %v315
                %v317 = vld [vmem:[%s295 + $0x7e8] sm:$0xff]
                %318 = vst [vmem:[%s296 + $0x7a0] sm:$0xff] %v317
                %v319 = vld [vmem:[%s295 + $0x7f0] sm:$0xff]
                %320 = vst [vmem:[%s296 + $0x7a8] sm:$0xff] %v319
                %s321 = sadd.s32 1, %s294
                %p322 = scmp.ge.s32.totalorder %s321, %s282
                %s323 = scalar_select %p322, 0, %s321
                %s324 = smul.u32 %s323, 24
                %s325 = smul.u32 %s323, 24
                %s326 = scalar_lea.vmem %s285, %s324
                %s327 = scalar_lea.vmem %s287, %s325 [#allocation2]
              $region40: #{tpu_custom_call.1} parent=27 // loop_footer
                %s291 = sadd.s32 %s289, 1
              $region41: #{tpu_custom_call.1} parent=27 // loop_footer_branch
                %288 = sbr.rel target = $region37
              $region42: #{tpu_custom_call.1} parent=27 // loop_exit
                _
            $region28: #{tpu_custom_call.1} parent=23 // pred_fallthru
              _
            // Predicated region
            $region43: #{tpu_custom_call.1} parent=23 // pred_check
              _
            $region44: #{tpu_custom_call.1} parent=23 // pred_check_branch
              %329 = sbr.rel target = $region46
            $region45: #{tpu_custom_call.1} parent=23 // pred_region
              _
            $region46: #{tpu_custom_call.1} parent=23 // pred_fallthru
              _
          $region24: #{tpu_custom_call.1} parent=19 // pred_fallthru
            _
          %330 = vnop
        $region20: #{tpu_custom_call.1} parent=15 // pred_fallthru
          _
      $region16: #{tpu_custom_call.1} parent=5 // pred_fallthru
        _
      %p331 = scmp.le.s32.totalorder 1, %s7
      %p332 = scmp.lt.s32.totalorder %s7, 3
      %p333 = pnand %p331, %p332
      %p334 = pneg %p333
      // Predicated region
      $region47: #{tpu_custom_call.1} parent=5 // pred_check
        _
      $region48: #{tpu_custom_call.1} parent=5 // pred_check_branch
        %336 = sbr.rel (%p333) target = $region50
      $region49: #{tpu_custom_call.1} parent=5 // pred_region
        %s337 = ssub.s32 %s7, 1
        %s338 = sand.u32 %s34, 1
        %s339 = sand.u32 %s34, 1
        %s340 = smul.addr %s339, 2592
        %s341 = scalar_lea.vmem [#allocation2], %s340
        // Predicated region
        $region51: #{tpu_custom_call.1} parent=49 // pred_check
          %p342 = pneg %p47
        $region52: #{tpu_custom_call.1} parent=49 // pred_check_branch
          %344 = sbr.rel (%p342) target = $region54
        $region53: #{tpu_custom_call.1} parent=49 // pred_region
          _
        $region54: #{tpu_custom_call.1} parent=49 // pred_fallthru
          _
        %s345 = sand.u32 %s34, 1
        %s346 = sand.u32 %s34, 1
        %s347 = smul.addr %s346, 2592
        %s348 = scalar_lea.vmem [#allocation2], %s347
        %p349 = pneg %p47
        %p350 = pneg %p44
        %p351 = pneg %p75
        %p352 = pneg %p72
        %s353 = smul.u32 4, %s16
        %s354 = smul.u32 27, %s17
        %p355 = scmp.lt.s32.totalorder %s353, 7
        %s356 = scalar_select %p355, %s353, 7
        %p357 = scmp.lt.s32.totalorder %s354, 26
        %s358 = scalar_select %p357, %s354, 26
        %s359 = smul.addr %s358, 3
        %s360 = smul.addr %s356, 81
        %s361 = sadd.s32 %s359, %s360
        %s362 = smul.addr %s361, 8
        %s363 = scalar_lea.vmem %s1, %s362
        %s364 = smul.u32 4, %s16
        %s365 = smul.u32 27, %s17
        %s366 = ssub.s32 28, %s365
        %p367 = scmp.lt.s32.totalorder %s366, 27
        %s368 = scalar_select %p367, %s366, 27
        %s369 = smul.u32 512, %s368
        %s370 = smul.u32 %s369, 3
        %s371 = smul.u32 4, %s16
        %s372 = smul.u32 27, %s17
        %p373 = scmp.lt.s32.totalorder %s371, 7
        %s374 = scalar_select %p373, %s371, 7
        %p375 = scmp.lt.s32.totalorder %s372, 26
        %s376 = scalar_select %p375, %s372, 26
        %s377 = smul.addr %s376, 3
        %s378 = smul.addr %s374, 81
        %s379 = sadd.s32 %s377, %s378
        %s380 = smul.addr %s379, 8
        %s381 = scalar_lea.vmem %s1, %s380
        %s382 = smul.u32 4, %s16
        %s383 = smul.u32 27, %s17
        %v384 = vld [vmem:[%s341] sm:$0xff]
        %v385 = vld [vmem:[%s341 + $0x8] sm:$0xff]
        %v386 = vld [vmem:[%s341 + $0x10] sm:$0xff]
        %v387 = vld [vmem:[%s341 + $0x18] sm:$0xff]
        %v388 = vld [vmem:[%s341 + $0x20] sm:$0xff]
        %v389 = vld [vmem:[%s341 + $0x28] sm:$0xff]
        %v390 = vld [vmem:[%s341 + $0x30] sm:$0xff]
        %v391 = vld [vmem:[%s341 + $0x38] sm:$0xff]
        %v392 = vld [vmem:[%s341 + $0x40] sm:$0xff]
        %v393 = vld [vmem:[%s341 + $0x48] sm:$0xff]
        %v394 = vld [vmem:[%s341 + $0x50] sm:$0xff]
        %v395 = vld [vmem:[%s341 + $0x58] sm:$0xff]
        %v396 = vld [vmem:[%s341 + $0x60] sm:$0xff]
        %v397 = vld [vmem:[%s341 + $0x68] sm:$0xff]
        %v398 = vld [vmem:[%s341 + $0x70] sm:$0xff]
        %v399 = vld [vmem:[%s341 + $0x78] sm:$0xff]
        %v400 = vld [vmem:[%s341 + $0x80] sm:$0xff]
        %v401 = vld [vmem:[%s341 + $0x88] sm:$0xff]
        %v402 = vld [vmem:[%s341 + $0x90] sm:$0xff]
        %v403 = vld [vmem:[%s341 + $0x98] sm:$0xff]
        %v404 = vld [vmem:[%s341 + $0xa0] sm:$0xff]
        %v405 = vld [vmem:[%s341 + $0xa8] sm:$0xff]
        %v406 = vld [vmem:[%s341 + $0xb0] sm:$0xff]
        %v407 = vld [vmem:[%s341 + $0xb8] sm:$0xff]
        %v408 = vld [vmem:[%s341 + $0xc0] sm:$0xff]
        %v409 = vld [vmem:[%s341 + $0xc8] sm:$0xff]
        %v410 = vld [vmem:[%s341 + $0xd0] sm:$0xff]
        %v411 = vld [vmem:[%s341 + $0xd8] sm:$0xff]
        %v412 = vld [vmem:[%s341 + $0xe0] sm:$0xff]
        %v413 = vld [vmem:[%s341 + $0xe8] sm:$0xff]
        %v414 = vld [vmem:[%s341 + $0xf0] sm:$0xff]
        %v415 = vld [vmem:[%s341 + $0xf8] sm:$0xff]
        %v416 = vld [vmem:[%s341 + $0x100] sm:$0xff]
        %v417 = vld [vmem:[%s341 + $0x108] sm:$0xff]
        %v418 = vld [vmem:[%s341 + $0x110] sm:$0xff]
        %v419 = vld [vmem:[%s341 + $0x118] sm:$0xff]
        %v420 = vld [vmem:[%s341 + $0x120] sm:$0xff]
        %v421 = vld [vmem:[%s341 + $0x128] sm:$0xff]
        %v422 = vld [vmem:[%s341 + $0x130] sm:$0xff]
        %v423 = vld [vmem:[%s341 + $0x138] sm:$0xff]
        %v424 = vld [vmem:[%s341 + $0x140] sm:$0xff]
        %v425 = vld [vmem:[%s341 + $0x148] sm:$0xff]
        %v426 = vld [vmem:[%s341 + $0x150] sm:$0xff]
        %v427 = vld [vmem:[%s341 + $0x158] sm:$0xff]
        %v428 = vld [vmem:[%s341 + $0x160] sm:$0xff]
        %v429 = vld [vmem:[%s341 + $0x168] sm:$0xff]
        %v430 = vld [vmem:[%s341 + $0x170] sm:$0xff]
        %v431 = vld [vmem:[%s341 + $0x178] sm:$0xff]
        %v432 = vld [vmem:[%s341 + $0x180] sm:$0xff]
        %v433 = vld [vmem:[%s341 + $0x188] sm:$0xff]
        %v434 = vld [vmem:[%s341 + $0x190] sm:$0xff]
        %v435 = vld [vmem:[%s341 + $0x198] sm:$0xff]
        %v436 = vld [vmem:[%s341 + $0x1a0] sm:$0xff]
        %v437 = vld [vmem:[%s341 + $0x1a8] sm:$0xff]
        %v438 = vld [vmem:[%s341 + $0x1b0] sm:$0xff]
        %v439 = vld [vmem:[%s341 + $0x1b8] sm:$0xff]
        %v440 = vld [vmem:[%s341 + $0x1c0] sm:$0xff]
        %v441 = vld [vmem:[%s341 + $0x1c8] sm:$0xff]
        %v442 = vld [vmem:[%s341 + $0x1d0] sm:$0xff]
        %v443 = vld [vmem:[%s341 + $0x1d8] sm:$0xff]
        %v444 = vld [vmem:[%s341 + $0x1e0] sm:$0xff]
        %v445 = vld [vmem:[%s341 + $0x1e8] sm:$0xff]
        %v446 = vld [vmem:[%s341 + $0x1f0] sm:$0xff]
        %v447 = vld [vmem:[%s341 + $0x1f8] sm:$0xff]
        %v448 = vld [vmem:[%s341 + $0x200] sm:$0xff]
        %v449 = vld [vmem:[%s341 + $0x208] sm:$0xff]
        %v450 = vld [vmem:[%s341 + $0x210] sm:$0xff]
        %v451 = vld [vmem:[%s341 + $0x218] sm:$0xff]
        %v452 = vld [vmem:[%s341 + $0x220] sm:$0xff]
        %v453 = vld [vmem:[%s341 + $0x228] sm:$0xff]
        %v454 = vld [vmem:[%s341 + $0x230] sm:$0xff]
        %v455 = vld [vmem:[%s341 + $0x238] sm:$0xff]
        %v456 = vld [vmem:[%s341 + $0x240] sm:$0xff]
        %v457 = vld [vmem:[%s341 + $0x248] sm:$0xff]
        %v458 = vld [vmem:[%s341 + $0x250] sm:$0xff]
        %v459 = vld [vmem:[%s341 + $0x258] sm:$0xff]
        %v460 = vld [vmem:[%s341 + $0x260] sm:$0xff]
        %v461 = vld [vmem:[%s341 + $0x268] sm:$0xff]
        %v462 = vld [vmem:[%s341 + $0x270] sm:$0xff]
        %v463 = vld [vmem:[%s341 + $0x278] sm:$0xff]
        %v464 = vld [vmem:[%s341 + $0x280] sm:$0xff]
        %v465 = vld [vmem:[%s341 + $0x288] sm:$0xff]
        %v466 = vld [vmem:[%s341 + $0x290] sm:$0xff]
        %v467 = vld [vmem:[%s341 + $0x298] sm:$0xff]
        %v468 = vld [vmem:[%s341 + $0x2a0] sm:$0xff]
        %v469 = vld [vmem:[%s341 + $0x2a8] sm:$0xff]
        %v470 = vld [vmem:[%s341 + $0x2b0] sm:$0xff]
        %v471 = vld [vmem:[%s341 + $0x2b8] sm:$0xff]
        %v472 = vld [vmem:[%s341 + $0x2c0] sm:$0xff]
        %v473 = vld [vmem:[%s341 + $0x2c8] sm:$0xff]
        %v474 = vld [vmem:[%s341 + $0x2d0] sm:$0xff]
        %v475 = vld [vmem:[%s341 + $0x2d8] sm:$0xff]
        %v476 = vld [vmem:[%s341 + $0x2e0] sm:$0xff]
        %v477 = vld [vmem:[%s341 + $0x2e8] sm:$0xff]
        %v478 = vld [vmem:[%s341 + $0x2f0] sm:$0xff]
        %v479 = vld [vmem:[%s341 + $0x2f8] sm:$0xff]
        %v480 = vld [vmem:[%s341 + $0x300] sm:$0xff]
        %v481 = vld [vmem:[%s341 + $0x308] sm:$0xff]
        %v482 = vld [vmem:[%s341 + $0x310] sm:$0xff]
        %v483 = vld [vmem:[%s341 + $0x318] sm:$0xff]
        %v484 = vld [vmem:[%s341 + $0x320] sm:$0xff]
        %v485 = vld [vmem:[%s341 + $0x328] sm:$0xff]
        %v486 = vld [vmem:[%s341 + $0x330] sm:$0xff]
        %v487 = vld [vmem:[%s341 + $0x338] sm:$0xff]
        %v488 = vld [vmem:[%s341 + $0x340] sm:$0xff]
        %v489 = vld [vmem:[%s341 + $0x348] sm:$0xff]
        %v490 = vld [vmem:[%s341 + $0x350] sm:$0xff]
        %v491 = vld [vmem:[%s341 + $0x358] sm:$0xff]
        %v492 = vld [vmem:[%s341 + $0x360] sm:$0xff]
        %v493 = vld [vmem:[%s341 + $0x368] sm:$0xff]
        %v494 = vld [vmem:[%s341 + $0x370] sm:$0xff]
        %v495 = vld [vmem:[%s341 + $0x378] sm:$0xff]
        %v496 = vld [vmem:[%s341 + $0x380] sm:$0xff]
        %v497 = vld [vmem:[%s341 + $0x388] sm:$0xff]
        %v498 = vld [vmem:[%s341 + $0x390] sm:$0xff]
        %v499 = vld [vmem:[%s341 + $0x398] sm:$0xff]
        %v500 = vld [vmem:[%s341 + $0x3a0] sm:$0xff]
        %v501 = vld [vmem:[%s341 + $0x3a8] sm:$0xff]
        %v502 = vld [vmem:[%s341 + $0x3b0] sm:$0xff]
        %v503 = vld [vmem:[%s341 + $0x3b8] sm:$0xff]
        %v504 = vld [vmem:[%s341 + $0x3c0] sm:$0xff]
        %v505 = vld [vmem:[%s341 + $0x3c8] sm:$0xff]
        %v506 = vld [vmem:[%s341 + $0x3d0] sm:$0xff]
        %v507 = vld [vmem:[%s341 + $0x3d8] sm:$0xff]
        %v508 = vld [vmem:[%s341 + $0x3e0] sm:$0xff]
        %v509 = vld [vmem:[%s341 + $0x3e8] sm:$0xff]
        %v510 = vld [vmem:[%s341 + $0x3f0] sm:$0xff]
        %v511 = vld [vmem:[%s341 + $0x3f8] sm:$0xff]
        %v512 = vld [vmem:[%s341 + $0x400] sm:$0xff]
        %v513 = vld [vmem:[%s341 + $0x408] sm:$0xff]
        %v514 = vld [vmem:[%s341 + $0x410] sm:$0xff]
        %v515 = vld [vmem:[%s341 + $0x418] sm:$0xff]
        %v516 = vld [vmem:[%s341 + $0x420] sm:$0xff]
        %v517 = vld [vmem:[%s341 + $0x428] sm:$0xff]
        %v518 = vld [vmem:[%s341 + $0x430] sm:$0xff]
        %v519 = vld [vmem:[%s341 + $0x438] sm:$0xff]
        %v520 = vld [vmem:[%s341 + $0x440] sm:$0xff]
        %v521 = vld [vmem:[%s341 + $0x448] sm:$0xff]
        %v522 = vld [vmem:[%s341 + $0x450] sm:$0xff]
        %v523 = vld [vmem:[%s341 + $0x458] sm:$0xff]
        %v524 = vld [vmem:[%s341 + $0x460] sm:$0xff]
        %v525 = vld [vmem:[%s341 + $0x468] sm:$0xff]
        %v526 = vld [vmem:[%s341 + $0x470] sm:$0xff]
        %v527 = vld [vmem:[%s341 + $0x478] sm:$0xff]
        %v528 = vld [vmem:[%s341 + $0x480] sm:$0xff]
        %v529 = vld [vmem:[%s341 + $0x488] sm:$0xff]
        %v530 = vld [vmem:[%s341 + $0x490] sm:$0xff]
        %v531 = vld [vmem:[%s341 + $0x498] sm:$0xff]
        %v532 = vld [vmem:[%s341 + $0x4a0] sm:$0xff]
        %v533 = vld [vmem:[%s341 + $0x4a8] sm:$0xff]
        %v534 = vld [vmem:[%s341 + $0x4b0] sm:$0xff]
        %v535 = vld [vmem:[%s341 + $0x4b8] sm:$0xff]
        %v536 = vld [vmem:[%s341 + $0x4c0] sm:$0xff]
        %v537 = vld [vmem:[%s341 + $0x4c8] sm:$0xff]
        %v538 = vld [vmem:[%s341 + $0x4d0] sm:$0xff]
        %v539 = vld [vmem:[%s341 + $0x4d8] sm:$0xff]
        %v540 = vld [vmem:[%s341 + $0x4e0] sm:$0xff]
        %v541 = vld [vmem:[%s341 + $0x4e8] sm:$0xff]
        %v542 = vld [vmem:[%s341 + $0x4f0] sm:$0xff]
        %v543 = vld [vmem:[%s341 + $0x4f8] sm:$0xff]
        %v544 = vld [vmem:[%s341 + $0x500] sm:$0xff]
        %v545 = vld [vmem:[%s341 + $0x508] sm:$0xff]
        %v546 = vld [vmem:[%s341 + $0x510] sm:$0xff]
        %v547 = vld [vmem:[%s341 + $0x518] sm:$0xff]
        %v548 = vld [vmem:[%s341 + $0x520] sm:$0xff]
        %v549 = vld [vmem:[%s341 + $0x528] sm:$0xff]
        %v550 = vld [vmem:[%s341 + $0x530] sm:$0xff]
        %v551 = vld [vmem:[%s341 + $0x538] sm:$0xff]
        %v552 = vld [vmem:[%s341 + $0x540] sm:$0xff]
        %v553 = vld [vmem:[%s341 + $0x548] sm:$0xff]
        %v554 = vld [vmem:[%s341 + $0x550] sm:$0xff]
        %v555 = vld [vmem:[%s341 + $0x558] sm:$0xff]
        %v556 = vld [vmem:[%s341 + $0x560] sm:$0xff]
        %v557 = vld [vmem:[%s341 + $0x568] sm:$0xff]
        %v558 = vld [vmem:[%s341 + $0x570] sm:$0xff]
        %v559 = vld [vmem:[%s341 + $0x578] sm:$0xff]
        %v560 = vld [vmem:[%s341 + $0x580] sm:$0xff]
        %v561 = vld [vmem:[%s341 + $0x588] sm:$0xff]
        %v562 = vld [vmem:[%s341 + $0x590] sm:$0xff]
        %v563 = vld [vmem:[%s341 + $0x598] sm:$0xff]
        %v564 = vld [vmem:[%s341 + $0x5a0] sm:$0xff]
        %v565 = vld [vmem:[%s341 + $0x5a8] sm:$0xff]
        %v566 = vld [vmem:[%s341 + $0x5b0] sm:$0xff]
        %v567 = vld [vmem:[%s341 + $0x5b8] sm:$0xff]
        %v568 = vld [vmem:[%s341 + $0x5c0] sm:$0xff]
        %v569 = vld [vmem:[%s341 + $0x5c8] sm:$0xff]
        %v570 = vld [vmem:[%s341 + $0x5d0] sm:$0xff]
        %v571 = vld [vmem:[%s341 + $0x5d8] sm:$0xff]
        %v572 = vld [vmem:[%s341 + $0x5e0] sm:$0xff]
        %v573 = vld [vmem:[%s341 + $0x5e8] sm:$0xff]
        %v574 = vld [vmem:[%s341 + $0x5f0] sm:$0xff]
        %v575 = vld [vmem:[%s341 + $0x5f8] sm:$0xff]
        %v576 = vld [vmem:[%s341 + $0x600] sm:$0xff]
        %v577 = vld [vmem:[%s341 + $0x608] sm:$0xff]
        %v578 = vld [vmem:[%s341 + $0x610] sm:$0xff]
        %v579 = vld [vmem:[%s341 + $0x618] sm:$0xff]
        %v580 = vld [vmem:[%s341 + $0x620] sm:$0xff]
        %v581 = vld [vmem:[%s341 + $0x628] sm:$0xff]
        %v582 = vld [vmem:[%s341 + $0x630] sm:$0xff]
        %v583 = vld [vmem:[%s341 + $0x638] sm:$0xff]
        %v584 = vld [vmem:[%s341 + $0x640] sm:$0xff]
        %v585 = vld [vmem:[%s341 + $0x648] sm:$0xff]
        %v586 = vld [vmem:[%s341 + $0x650] sm:$0xff]
        %v587 = vld [vmem:[%s341 + $0x658] sm:$0xff]
        %v588 = vld [vmem:[%s341 + $0x660] sm:$0xff]
        %v589 = vld [vmem:[%s341 + $0x668] sm:$0xff]
        %v590 = vld [vmem:[%s341 + $0x670] sm:$0xff]
        %v591 = vld [vmem:[%s341 + $0x678] sm:$0xff]
        %v592 = vld [vmem:[%s341 + $0x680] sm:$0xff]
        %v593 = vld [vmem:[%s341 + $0x688] sm:$0xff]
        %v594 = vld [vmem:[%s341 + $0x690] sm:$0xff]
        %v595 = vld [vmem:[%s341 + $0x698] sm:$0xff]
        %v596 = vld [vmem:[%s341 + $0x6a0] sm:$0xff]
        %v597 = vld [vmem:[%s341 + $0x6a8] sm:$0xff]
        %v598 = vld [vmem:[%s341 + $0x6b0] sm:$0xff]
        %v599 = vld [vmem:[%s341 + $0x6b8] sm:$0xff]
        %v600 = vld [vmem:[%s341 + $0x6c0] sm:$0xff]
        %v601 = vld [vmem:[%s341 + $0x6c8] sm:$0xff]
        %v602 = vld [vmem:[%s341 + $0x6d0] sm:$0xff]
        %v603 = vld [vmem:[%s341 + $0x6d8] sm:$0xff]
        %v604 = vld [vmem:[%s341 + $0x6e0] sm:$0xff]
        %v605 = vld [vmem:[%s341 + $0x6e8] sm:$0xff]
        %v606 = vld [vmem:[%s341 + $0x6f0] sm:$0xff]
        %v607 = vld [vmem:[%s341 + $0x6f8] sm:$0xff]
        %v608 = vld [vmem:[%s341 + $0x700] sm:$0xff]
        %v609 = vld [vmem:[%s341 + $0x708] sm:$0xff]
        %v610 = vld [vmem:[%s341 + $0x710] sm:$0xff]
        %v611 = vld [vmem:[%s341 + $0x718] sm:$0xff]
        %v612 = vld [vmem:[%s341 + $0x720] sm:$0xff]
        %v613 = vld [vmem:[%s341 + $0x728] sm:$0xff]
        %v614 = vld [vmem:[%s341 + $0x730] sm:$0xff]
        %v615 = vld [vmem:[%s341 + $0x738] sm:$0xff]
        %v616 = vld [vmem:[%s341 + $0x740] sm:$0xff]
        %v617 = vld [vmem:[%s341 + $0x748] sm:$0xff]
        %v618 = vld [vmem:[%s341 + $0x750] sm:$0xff]
        %v619 = vld [vmem:[%s341 + $0x758] sm:$0xff]
        %v620 = vld [vmem:[%s341 + $0x760] sm:$0xff]
        %v621 = vld [vmem:[%s341 + $0x768] sm:$0xff]
        %v622 = vld [vmem:[%s341 + $0x770] sm:$0xff]
        %v623 = vld [vmem:[%s341 + $0x778] sm:$0xff]
        %v624 = vld [vmem:[%s341 + $0x780] sm:$0xff]
        %v625 = vld [vmem:[%s341 + $0x788] sm:$0xff]
        %v626 = vld [vmem:[%s341 + $0x790] sm:$0xff]
        %v627 = vld [vmem:[%s341 + $0x798] sm:$0xff]
        %v628 = vld [vmem:[%s341 + $0x7a0] sm:$0xff]
        %v629 = vld [vmem:[%s341 + $0x7a8] sm:$0xff]
        %v630 = vld [vmem:[%s341 + $0x7b0] sm:$0xff]
        %v631 = vld [vmem:[%s341 + $0x7b8] sm:$0xff]
        %v632 = vld [vmem:[%s341 + $0x7c0] sm:$0xff]
        %v633 = vld [vmem:[%s341 + $0x7c8] sm:$0xff]
        %v634 = vld [vmem:[%s341 + $0x7d0] sm:$0xff]
        %v635 = vld [vmem:[%s341 + $0x7d8] sm:$0xff]
        %v636 = vld [vmem:[%s341 + $0x7e0] sm:$0xff]
        %v637 = vld [vmem:[%s341 + $0x7e8] sm:$0xff]
        %v638 = vld [vmem:[%s341 + $0x7f0] sm:$0xff]
        %v639 = vld [vmem:[%s341 + $0x7f8] sm:$0xff]
        %v640 = vld [vmem:[%s341 + $0x800] sm:$0xff]
        %v641 = vld [vmem:[%s341 + $0x808] sm:$0xff]
        %v642 = vld [vmem:[%s341 + $0x810] sm:$0xff]
        %v643 = vld [vmem:[%s341 + $0x818] sm:$0xff]
        %v644 = vld [vmem:[%s341 + $0x820] sm:$0xff]
        %v645 = vld [vmem:[%s341 + $0x828] sm:$0xff]
        %v646 = vld [vmem:[%s341 + $0x830] sm:$0xff]
        %v647 = vld [vmem:[%s341 + $0x838] sm:$0xff]
        %v648 = vld [vmem:[%s341 + $0x840] sm:$0xff]
        %v649 = vld [vmem:[%s341 + $0x848] sm:$0xff]
        %v650 = vld [vmem:[%s341 + $0x850] sm:$0xff]
        %v651 = vld [vmem:[%s341 + $0x858] sm:$0xff]
        %v652 = vld [vmem:[%s341 + $0x860] sm:$0xff]
        %v653 = vld [vmem:[%s341 + $0x868] sm:$0xff]
        %v654 = vld [vmem:[%s341 + $0x870] sm:$0xff]
        %v655 = vld [vmem:[%s341 + $0x878] sm:$0xff]
        %v656 = vld [vmem:[%s341 + $0x880] sm:$0xff]
        %v657 = vld [vmem:[%s341 + $0x888] sm:$0xff]
        %v658 = vld [vmem:[%s341 + $0x890] sm:$0xff]
        %v659 = vld [vmem:[%s341 + $0x898] sm:$0xff]
        %v660 = vld [vmem:[%s341 + $0x8a0] sm:$0xff]
        %v661 = vld [vmem:[%s341 + $0x8a8] sm:$0xff]
        %v662 = vld [vmem:[%s341 + $0x8b0] sm:$0xff]
        %v663 = vld [vmem:[%s341 + $0x8b8] sm:$0xff]
        %v664 = vld [vmem:[%s341 + $0x8c0] sm:$0xff]
        %v665 = vld [vmem:[%s341 + $0x8c8] sm:$0xff]
        %v666 = vld [vmem:[%s341 + $0x8d0] sm:$0xff]
        %v667 = vld [vmem:[%s341 + $0x8d8] sm:$0xff]
        %v668 = vld [vmem:[%s341 + $0x8e0] sm:$0xff]
        %v669 = vld [vmem:[%s341 + $0x8e8] sm:$0xff]
        %v670 = vld [vmem:[%s341 + $0x8f0] sm:$0xff]
        %v671 = vld [vmem:[%s341 + $0x8f8] sm:$0xff]
        %v672 = vld [vmem:[%s341 + $0x900] sm:$0xff]
        %v673 = vld [vmem:[%s341 + $0x908] sm:$0xff]
        %v674 = vld [vmem:[%s341 + $0x910] sm:$0xff]
        %v675 = vld [vmem:[%s341 + $0x918] sm:$0xff]
        %v676 = vld [vmem:[%s341 + $0x920] sm:$0xff]
        %v677 = vld [vmem:[%s341 + $0x928] sm:$0xff]
        %v678 = vld [vmem:[%s341 + $0x930] sm:$0xff]
        %v679 = vld [vmem:[%s341 + $0x938] sm:$0xff]
        %v680 = vld [vmem:[%s341 + $0x940] sm:$0xff]
        %v681 = vld [vmem:[%s341 + $0x948] sm:$0xff]
        %v682 = vld [vmem:[%s341 + $0x950] sm:$0xff]
        %v683 = vld [vmem:[%s341 + $0x958] sm:$0xff]
        %v684 = vld [vmem:[%s341 + $0x960] sm:$0xff]
        %v685 = vld [vmem:[%s341 + $0x968] sm:$0xff]
        %v686 = vld [vmem:[%s341 + $0x970] sm:$0xff]
        %v687 = vld [vmem:[%s341 + $0x978] sm:$0xff]
        %v688 = vld [vmem:[%s341 + $0x980] sm:$0xff]
        %v689 = vld [vmem:[%s341 + $0x988] sm:$0xff]
        %v690 = vld [vmem:[%s341 + $0x990] sm:$0xff]
        %v691 = vld [vmem:[%s341 + $0x998] sm:$0xff]
        %v692 = vld [vmem:[%s341 + $0x9a0] sm:$0xff]
        %v693 = vld [vmem:[%s341 + $0x9a8] sm:$0xff]
        %v694 = vld [vmem:[%s341 + $0x9b0] sm:$0xff]
        %v695 = vld [vmem:[%s341 + $0x9b8] sm:$0xff]
        %v696 = vld [vmem:[%s341 + $0x9c0] sm:$0xff]
        %v697 = vld [vmem:[%s341 + $0x9c8] sm:$0xff]
        %v698 = vld [vmem:[%s341 + $0x9d0] sm:$0xff]
        %v699 = vld [vmem:[%s341 + $0x9d8] sm:$0xff]
        %v700 = vld [vmem:[%s341 + $0x9e0] sm:$0xff]
        %v701 = vld [vmem:[%s341 + $0x9e8] sm:$0xff]
        %v702 = vld [vmem:[%s341 + $0x9f0] sm:$0xff]
        %v703 = vld [vmem:[%s341 + $0x9f8] sm:$0xff]
        %v704 = vld [vmem:[%s341 + $0xa00] sm:$0xff]
        %v705 = vld [vmem:[%s341 + $0xa08] sm:$0xff]
        %v706 = vld [vmem:[%s341 + $0xa10] sm:$0xff]
        %v707 = vld [vmem:[%s341 + $0xa18] sm:$0xff]
        %708 = vst [vmem:[%s381] sm:$0xff] %v384
        %709 = vst [vmem:[%s381 + $0x8] sm:$0xff] %v385
        %vm710 = vcmask 261120
        %711 = vst.msk [vmem:[%s381 + $0x10] sm:$0xff] %vm710, %v386
        %712 = vst [vmem:[%s381 + $0x18] sm:$0xff] %v387
        %713 = vst [vmem:[%s381 + $0x20] sm:$0xff] %v388
        %714 = vst.msk [vmem:[%s381 + $0x28] sm:$0xff] %vm710, %v389
        %715 = vst [vmem:[%s381 + $0x30] sm:$0xff] %v390
        %716 = vst [vmem:[%s381 + $0x38] sm:$0xff] %v391
        %717 = vst.msk [vmem:[%s381 + $0x40] sm:$0xff] %vm710, %v392
        %718 = vst [vmem:[%s381 + $0x48] sm:$0xff] %v393
        %719 = vst [vmem:[%s381 + $0x50] sm:$0xff] %v394
        %720 = vst.msk [vmem:[%s381 + $0x58] sm:$0xff] %vm710, %v395
        %721 = vst [vmem:[%s381 + $0x60] sm:$0xff] %v396
        %722 = vst [vmem:[%s381 + $0x68] sm:$0xff] %v397
        %723 = vst.msk [vmem:[%s381 + $0x70] sm:$0xff] %vm710, %v398
        %724 = vst [vmem:[%s381 + $0x78] sm:$0xff] %v399
        %725 = vst [vmem:[%s381 + $0x80] sm:$0xff] %v400
        %726 = vst.msk [vmem:[%s381 + $0x88] sm:$0xff] %vm710, %v401
        %727 = vst [vmem:[%s381 + $0x90] sm:$0xff] %v402
        %728 = vst [vmem:[%s381 + $0x98] sm:$0xff] %v403
        %729 = vst.msk [vmem:[%s381 + $0xa0] sm:$0xff] %vm710, %v404
        %730 = vst [vmem:[%s381 + $0xa8] sm:$0xff] %v405
        %731 = vst [vmem:[%s381 + $0xb0] sm:$0xff] %v406
        %732 = vst.msk [vmem:[%s381 + $0xb8] sm:$0xff] %vm710, %v407
        %733 = vst [vmem:[%s381 + $0xc0] sm:$0xff] %v408
        %734 = vst [vmem:[%s381 + $0xc8] sm:$0xff] %v409
        %735 = vst.msk [vmem:[%s381 + $0xd0] sm:$0xff] %vm710, %v410
        %736 = vst [vmem:[%s381 + $0xd8] sm:$0xff] %v411
        %737 = vst [vmem:[%s381 + $0xe0] sm:$0xff] %v412
        %738 = vst.msk [vmem:[%s381 + $0xe8] sm:$0xff] %vm710, %v413
        %739 = vst [vmem:[%s381 + $0xf0] sm:$0xff] %v414
        %740 = vst [vmem:[%s381 + $0xf8] sm:$0xff] %v415
        %741 = vst.msk [vmem:[%s381 + $0x100] sm:$0xff] %vm710, %v416
        %742 = vst [vmem:[%s381 + $0x108] sm:$0xff] %v417
        %743 = vst [vmem:[%s381 + $0x110] sm:$0xff] %v418
        %744 = vst.msk [vmem:[%s381 + $0x118] sm:$0xff] %vm710, %v419
        %745 = vst [vmem:[%s381 + $0x120] sm:$0xff] %v420
        %746 = vst [vmem:[%s381 + $0x128] sm:$0xff] %v421
        %747 = vst.msk [vmem:[%s381 + $0x130] sm:$0xff] %vm710, %v422
        %748 = vst [vmem:[%s381 + $0x138] sm:$0xff] %v423
        %749 = vst [vmem:[%s381 + $0x140] sm:$0xff] %v424
        %750 = vst.msk [vmem:[%s381 + $0x148] sm:$0xff] %vm710, %v425
        %751 = vst [vmem:[%s381 + $0x150] sm:$0xff] %v426
        %752 = vst [vmem:[%s381 + $0x158] sm:$0xff] %v427
        %753 = vst.msk [vmem:[%s381 + $0x160] sm:$0xff] %vm710, %v428
        %754 = vst [vmem:[%s381 + $0x168] sm:$0xff] %v429
        %755 = vst [vmem:[%s381 + $0x170] sm:$0xff] %v430
        %756 = vst.msk [vmem:[%s381 + $0x178] sm:$0xff] %vm710, %v431
        %757 = vst [vmem:[%s381 + $0x180] sm:$0xff] %v432
        %758 = vst [vmem:[%s381 + $0x188] sm:$0xff] %v433
        %759 = vst.msk [vmem:[%s381 + $0x190] sm:$0xff] %vm710, %v434
        %760 = vst [vmem:[%s381 + $0x198] sm:$0xff] %v435
        %761 = vst [vmem:[%s381 + $0x1a0] sm:$0xff] %v436
        %762 = vst.msk [vmem:[%s381 + $0x1a8] sm:$0xff] %vm710, %v437
        %763 = vst [vmem:[%s381 + $0x1b0] sm:$0xff] %v438
        %764 = vst [vmem:[%s381 + $0x1b8] sm:$0xff] %v439
        %765 = vst.msk [vmem:[%s381 + $0x1c0] sm:$0xff] %vm710, %v440
        %766 = vst [vmem:[%s381 + $0x1c8] sm:$0xff] %v441
        %767 = vst [vmem:[%s381 + $0x1d0] sm:$0xff] %v442
        %768 = vst.msk [vmem:[%s381 + $0x1d8] sm:$0xff] %vm710, %v443
        %769 = vst [vmem:[%s381 + $0x1e0] sm:$0xff] %v444
        %770 = vst [vmem:[%s381 + $0x1e8] sm:$0xff] %v445
        %771 = vst.msk [vmem:[%s381 + $0x1f0] sm:$0xff] %vm710, %v446
        %772 = vst [vmem:[%s381 + $0x1f8] sm:$0xff] %v447
        %773 = vst [vmem:[%s381 + $0x200] sm:$0xff] %v448
        %774 = vst.msk [vmem:[%s381 + $0x208] sm:$0xff] %vm710, %v449
        %775 = vst [vmem:[%s381 + $0x210] sm:$0xff] %v450
        %776 = vst [vmem:[%s381 + $0x218] sm:$0xff] %v451
        %777 = vst.msk [vmem:[%s381 + $0x220] sm:$0xff] %vm710, %v452
        %778 = vst [vmem:[%s381 + $0x228] sm:$0xff] %v453
        %779 = vst [vmem:[%s381 + $0x230] sm:$0xff] %v454
        %780 = vst.msk [vmem:[%s381 + $0x238] sm:$0xff] %vm710, %v455
        %781 = vst [vmem:[%s381 + $0x240] sm:$0xff] %v456
        %782 = vst [vmem:[%s381 + $0x248] sm:$0xff] %v457
        %783 = vst.msk [vmem:[%s381 + $0x250] sm:$0xff] %vm710, %v458
        %784 = vst [vmem:[%s381 + $0x258] sm:$0xff] %v459
        %785 = vst [vmem:[%s381 + $0x260] sm:$0xff] %v460
        %786 = vst.msk [vmem:[%s381 + $0x268] sm:$0xff] %vm710, %v461
        %787 = vst [vmem:[%s381 + $0x270] sm:$0xff] %v462
        %788 = vst [vmem:[%s381 + $0x278] sm:$0xff] %v463
        %789 = vst.msk [vmem:[%s381 + $0x280] sm:$0xff] %vm710, %v464
        %790 = vst [vmem:[%s381 + $0x288] sm:$0xff] %v465
        %791 = vst [vmem:[%s381 + $0x290] sm:$0xff] %v466
        %792 = vst.msk [vmem:[%s381 + $0x298] sm:$0xff] %vm710, %v467
        %793 = vst [vmem:[%s381 + $0x2a0] sm:$0xff] %v468
        %794 = vst [vmem:[%s381 + $0x2a8] sm:$0xff] %v469
        %795 = vst.msk [vmem:[%s381 + $0x2b0] sm:$0xff] %vm710, %v470
        %796 = vst [vmem:[%s381 + $0x2b8] sm:$0xff] %v471
        %797 = vst [vmem:[%s381 + $0x2c0] sm:$0xff] %v472
        %798 = vst.msk [vmem:[%s381 + $0x2c8] sm:$0xff] %vm710, %v473
        %799 = vst [vmem:[%s381 + $0x2d0] sm:$0xff] %v474
        %800 = vst [vmem:[%s381 + $0x2d8] sm:$0xff] %v475
        %801 = vst.msk [vmem:[%s381 + $0x2e0] sm:$0xff] %vm710, %v476
        %802 = vst [vmem:[%s381 + $0x2e8] sm:$0xff] %v477
        %803 = vst [vmem:[%s381 + $0x2f0] sm:$0xff] %v478
        %804 = vst.msk [vmem:[%s381 + $0x2f8] sm:$0xff] %vm710, %v479
        %805 = vst [vmem:[%s381 + $0x300] sm:$0xff] %v480
        %806 = vst [vmem:[%s381 + $0x308] sm:$0xff] %v481
        %807 = vst.msk [vmem:[%s381 + $0x310] sm:$0xff] %vm710, %v482
        %808 = vst [vmem:[%s381 + $0x318] sm:$0xff] %v483
        %809 = vst [vmem:[%s381 + $0x320] sm:$0xff] %v484
        %810 = vst.msk [vmem:[%s381 + $0x328] sm:$0xff] %vm710, %v485
        %811 = vst [vmem:[%s381 + $0x330] sm:$0xff] %v486
        %812 = vst [vmem:[%s381 + $0x338] sm:$0xff] %v487
        %813 = vst.msk [vmem:[%s381 + $0x340] sm:$0xff] %vm710, %v488
        %814 = vst [vmem:[%s381 + $0x348] sm:$0xff] %v489
        %815 = vst [vmem:[%s381 + $0x350] sm:$0xff] %v490
        %816 = vst.msk [vmem:[%s381 + $0x358] sm:$0xff] %vm710, %v491
        %817 = vst [vmem:[%s381 + $0x360] sm:$0xff] %v492
        %818 = vst [vmem:[%s381 + $0x368] sm:$0xff] %v493
        %819 = vst.msk [vmem:[%s381 + $0x370] sm:$0xff] %vm710, %v494
        %820 = vst [vmem:[%s381 + $0x378] sm:$0xff] %v495
        %821 = vst [vmem:[%s381 + $0x380] sm:$0xff] %v496
        %822 = vst.msk [vmem:[%s381 + $0x388] sm:$0xff] %vm710, %v497
        %823 = vst [vmem:[%s381 + $0x390] sm:$0xff] %v498
        %824 = vst [vmem:[%s381 + $0x398] sm:$0xff] %v499
        %825 = vst.msk [vmem:[%s381 + $0x3a0] sm:$0xff] %vm710, %v500
        %826 = vst [vmem:[%s381 + $0x3a8] sm:$0xff] %v501
        %827 = vst [vmem:[%s381 + $0x3b0] sm:$0xff] %v502
        %828 = vst.msk [vmem:[%s381 + $0x3b8] sm:$0xff] %vm710, %v503
        %829 = vst [vmem:[%s381 + $0x3c0] sm:$0xff] %v504
        %830 = vst [vmem:[%s381 + $0x3c8] sm:$0xff] %v505
        %831 = vst.msk [vmem:[%s381 + $0x3d0] sm:$0xff] %vm710, %v506
        %832 = vst [vmem:[%s381 + $0x3d8] sm:$0xff] %v507
        %833 = vst [vmem:[%s381 + $0x3e0] sm:$0xff] %v508
        %834 = vst.msk [vmem:[%s381 + $0x3e8] sm:$0xff] %vm710, %v509
        %835 = vst [vmem:[%s381 + $0x3f0] sm:$0xff] %v510
        %836 = vst [vmem:[%s381 + $0x3f8] sm:$0xff] %v511
        %837 = vst.msk [vmem:[%s381 + $0x400] sm:$0xff] %vm710, %v512
        %838 = vst [vmem:[%s381 + $0x408] sm:$0xff] %v513
        %839 = vst [vmem:[%s381 + $0x410] sm:$0xff] %v514
        %840 = vst.msk [vmem:[%s381 + $0x418] sm:$0xff] %vm710, %v515
        %841 = vst [vmem:[%s381 + $0x420] sm:$0xff] %v516
        %842 = vst [vmem:[%s381 + $0x428] sm:$0xff] %v517
        %843 = vst.msk [vmem:[%s381 + $0x430] sm:$0xff] %vm710, %v518
        %844 = vst [vmem:[%s381 + $0x438] sm:$0xff] %v519
        %845 = vst [vmem:[%s381 + $0x440] sm:$0xff] %v520
        %846 = vst.msk [vmem:[%s381 + $0x448] sm:$0xff] %vm710, %v521
        %847 = vst [vmem:[%s381 + $0x450] sm:$0xff] %v522
        %848 = vst [vmem:[%s381 + $0x458] sm:$0xff] %v523
        %849 = vst.msk [vmem:[%s381 + $0x460] sm:$0xff] %vm710, %v524
        %850 = vst [vmem:[%s381 + $0x468] sm:$0xff] %v525
        %851 = vst [vmem:[%s381 + $0x470] sm:$0xff] %v526
        %852 = vst.msk [vmem:[%s381 + $0x478] sm:$0xff] %vm710, %v527
        %853 = vst [vmem:[%s381 + $0x480] sm:$0xff] %v528
        %854 = vst [vmem:[%s381 + $0x488] sm:$0xff] %v529
        %855 = vst.msk [vmem:[%s381 + $0x490] sm:$0xff] %vm710, %v530
        %856 = vst [vmem:[%s381 + $0x498] sm:$0xff] %v531
        %857 = vst [vmem:[%s381 + $0x4a0] sm:$0xff] %v532
        %858 = vst.msk [vmem:[%s381 + $0x4a8] sm:$0xff] %vm710, %v533
        %859 = vst [vmem:[%s381 + $0x4b0] sm:$0xff] %v534
        %860 = vst [vmem:[%s381 + $0x4b8] sm:$0xff] %v535
        %861 = vst.msk [vmem:[%s381 + $0x4c0] sm:$0xff] %vm710, %v536
        %862 = vst [vmem:[%s381 + $0x4c8] sm:$0xff] %v537
        %863 = vst [vmem:[%s381 + $0x4d0] sm:$0xff] %v538
        %864 = vst.msk [vmem:[%s381 + $0x4d8] sm:$0xff] %vm710, %v539
        %865 = vst [vmem:[%s381 + $0x4e0] sm:$0xff] %v540
        %866 = vst [vmem:[%s381 + $0x4e8] sm:$0xff] %v541
        %867 = vst.msk [vmem:[%s381 + $0x4f0] sm:$0xff] %vm710, %v542
        %868 = vst [vmem:[%s381 + $0x4f8] sm:$0xff] %v543
        %869 = vst [vmem:[%s381 + $0x500] sm:$0xff] %v544
        %870 = vst.msk [vmem:[%s381 + $0x508] sm:$0xff] %vm710, %v545
        %871 = vst [vmem:[%s381 + $0x510] sm:$0xff] %v546
        %872 = vst [vmem:[%s381 + $0x518] sm:$0xff] %v547
        %873 = vst.msk [vmem:[%s381 + $0x520] sm:$0xff] %vm710, %v548
        %874 = vst [vmem:[%s381 + $0x528] sm:$0xff] %v549
        %875 = vst [vmem:[%s381 + $0x530] sm:$0xff] %v550
        %876 = vst.msk [vmem:[%s381 + $0x538] sm:$0xff] %vm710, %v551
        %877 = vst [vmem:[%s381 + $0x540] sm:$0xff] %v552
        %878 = vst [vmem:[%s381 + $0x548] sm:$0xff] %v553
        %879 = vst.msk [vmem:[%s381 + $0x550] sm:$0xff] %vm710, %v554
        %880 = vst [vmem:[%s381 + $0x558] sm:$0xff] %v555
        %881 = vst [vmem:[%s381 + $0x560] sm:$0xff] %v556
        %882 = vst.msk [vmem:[%s381 + $0x568] sm:$0xff] %vm710, %v557
        %883 = vst [vmem:[%s381 + $0x570] sm:$0xff] %v558
        %884 = vst [vmem:[%s381 + $0x578] sm:$0xff] %v559
        %885 = vst.msk [vmem:[%s381 + $0x580] sm:$0xff] %vm710, %v560
        %886 = vst [vmem:[%s381 + $0x588] sm:$0xff] %v561
        %887 = vst [vmem:[%s381 + $0x590] sm:$0xff] %v562
        %888 = vst.msk [vmem:[%s381 + $0x598] sm:$0xff] %vm710, %v563
        %889 = vst [vmem:[%s381 + $0x5a0] sm:$0xff] %v564
        %890 = vst [vmem:[%s381 + $0x5a8] sm:$0xff] %v565
        %891 = vst.msk [vmem:[%s381 + $0x5b0] sm:$0xff] %vm710, %v566
        %892 = vst [vmem:[%s381 + $0x5b8] sm:$0xff] %v567
        %893 = vst [vmem:[%s381 + $0x5c0] sm:$0xff] %v568
        %894 = vst.msk [vmem:[%s381 + $0x5c8] sm:$0xff] %vm710, %v569
        %895 = vst [vmem:[%s381 + $0x5d0] sm:$0xff] %v570
        %896 = vst [vmem:[%s381 + $0x5d8] sm:$0xff] %v571
        %897 = vst.msk [vmem:[%s381 + $0x5e0] sm:$0xff] %vm710, %v572
        %898 = vst [vmem:[%s381 + $0x5e8] sm:$0xff] %v573
        %899 = vst [vmem:[%s381 + $0x5f0] sm:$0xff] %v574
        %900 = vst.msk [vmem:[%s381 + $0x5f8] sm:$0xff] %vm710, %v575
        %901 = vst [vmem:[%s381 + $0x600] sm:$0xff] %v576
        %902 = vst [vmem:[%s381 + $0x608] sm:$0xff] %v577
        %903 = vst.msk [vmem:[%s381 + $0x610] sm:$0xff] %vm710, %v578
        %904 = vst [vmem:[%s381 + $0x618] sm:$0xff] %v579
        %905 = vst [vmem:[%s381 + $0x620] sm:$0xff] %v580
        %906 = vst.msk [vmem:[%s381 + $0x628] sm:$0xff] %vm710, %v581
        %907 = vst [vmem:[%s381 + $0x630] sm:$0xff] %v582
        %908 = vst [vmem:[%s381 + $0x638] sm:$0xff] %v583
        %909 = vst.msk [vmem:[%s381 + $0x640] sm:$0xff] %vm710, %v584
        %910 = vst [vmem:[%s381 + $0x648] sm:$0xff] %v585
        %911 = vst [vmem:[%s381 + $0x650] sm:$0xff] %v586
        %912 = vst.msk [vmem:[%s381 + $0x658] sm:$0xff] %vm710, %v587
        %913 = vst [vmem:[%s381 + $0x660] sm:$0xff] %v588
        %914 = vst [vmem:[%s381 + $0x668] sm:$0xff] %v589
        %915 = vst.msk [vmem:[%s381 + $0x670] sm:$0xff] %vm710, %v590
        %916 = vst [vmem:[%s381 + $0x678] sm:$0xff] %v591
        %917 = vst [vmem:[%s381 + $0x680] sm:$0xff] %v592
        %918 = vst.msk [vmem:[%s381 + $0x688] sm:$0xff] %vm710, %v593
        %919 = vst [vmem:[%s381 + $0x690] sm:$0xff] %v594
        %920 = vst [vmem:[%s381 + $0x698] sm:$0xff] %v595
        %921 = vst.msk [vmem:[%s381 + $0x6a0] sm:$0xff] %vm710, %v596
        %922 = vst [vmem:[%s381 + $0x6a8] sm:$0xff] %v597
        %923 = vst [vmem:[%s381 + $0x6b0] sm:$0xff] %v598
        %924 = vst.msk [vmem:[%s381 + $0x6b8] sm:$0xff] %vm710, %v599
        %925 = vst [vmem:[%s381 + $0x6c0] sm:$0xff] %v600
        %926 = vst [vmem:[%s381 + $0x6c8] sm:$0xff] %v601
        %927 = vst.msk [vmem:[%s381 + $0x6d0] sm:$0xff] %vm710, %v602
        %928 = vst [vmem:[%s381 + $0x6d8] sm:$0xff] %v603
        %929 = vst [vmem:[%s381 + $0x6e0] sm:$0xff] %v604
        %930 = vst.msk [vmem:[%s381 + $0x6e8] sm:$0xff] %vm710, %v605
        %931 = vst [vmem:[%s381 + $0x6f0] sm:$0xff] %v606
        %932 = vst [vmem:[%s381 + $0x6f8] sm:$0xff] %v607
        %933 = vst.msk [vmem:[%s381 + $0x700] sm:$0xff] %vm710, %v608
        %934 = vst [vmem:[%s381 + $0x708] sm:$0xff] %v609
        %935 = vst [vmem:[%s381 + $0x710] sm:$0xff] %v610
        %936 = vst.msk [vmem:[%s381 + $0x718] sm:$0xff] %vm710, %v611
        %937 = vst [vmem:[%s381 + $0x720] sm:$0xff] %v612
        %938 = vst [vmem:[%s381 + $0x728] sm:$0xff] %v613
        %939 = vst.msk [vmem:[%s381 + $0x730] sm:$0xff] %vm710, %v614
        %940 = vst [vmem:[%s381 + $0x738] sm:$0xff] %v615
        %941 = vst [vmem:[%s381 + $0x740] sm:$0xff] %v616
        %942 = vst.msk [vmem:[%s381 + $0x748] sm:$0xff] %vm710, %v617
        %943 = vst [vmem:[%s381 + $0x750] sm:$0xff] %v618
        %944 = vst [vmem:[%s381 + $0x758] sm:$0xff] %v619
        %945 = vst.msk [vmem:[%s381 + $0x760] sm:$0xff] %vm710, %v620
        %946 = vst [vmem:[%s381 + $0x768] sm:$0xff] %v621
        %947 = vst [vmem:[%s381 + $0x770] sm:$0xff] %v622
        %948 = vst.msk [vmem:[%s381 + $0x778] sm:$0xff] %vm710, %v623
        %949 = vst [vmem:[%s381 + $0x780] sm:$0xff] %v624
        %950 = vst [vmem:[%s381 + $0x788] sm:$0xff] %v625
        %951 = vst.msk [vmem:[%s381 + $0x790] sm:$0xff] %vm710, %v626
        %952 = vst [vmem:[%s381 + $0x798] sm:$0xff] %v627
        %953 = vst [vmem:[%s381 + $0x7a0] sm:$0xff] %v628
        %954 = vst.msk [vmem:[%s381 + $0x7a8] sm:$0xff] %vm710, %v629
        %955 = vst [vmem:[%s381 + $0x7b0] sm:$0xff] %v630
        %956 = vst [vmem:[%s381 + $0x7b8] sm:$0xff] %v631
        %957 = vst.msk [vmem:[%s381 + $0x7c0] sm:$0xff] %vm710, %v632
        %958 = vst [vmem:[%s381 + $0x7c8] sm:$0xff] %v633
        %959 = vst [vmem:[%s381 + $0x7d0] sm:$0xff] %v634
        %960 = vst.msk [vmem:[%s381 + $0x7d8] sm:$0xff] %vm710, %v635
        %961 = vst [vmem:[%s381 + $0x7e0] sm:$0xff] %v636
        %962 = vst [vmem:[%s381 + $0x7e8] sm:$0xff] %v637
        %963 = vst.msk [vmem:[%s381 + $0x7f0] sm:$0xff] %vm710, %v638
        %964 = vst [vmem:[%s381 + $0x7f8] sm:$0xff] %v639
        %965 = vst [vmem:[%s381 + $0x800] sm:$0xff] %v640
        %966 = vst.msk [vmem:[%s381 + $0x808] sm:$0xff] %vm710, %v641
        %967 = vst [vmem:[%s381 + $0x810] sm:$0xff] %v642
        %968 = vst [vmem:[%s381 + $0x818] sm:$0xff] %v643
        %969 = vst.msk [vmem:[%s381 + $0x820] sm:$0xff] %vm710, %v644
        %970 = vst [vmem:[%s381 + $0x828] sm:$0xff] %v645
        %971 = vst [vmem:[%s381 + $0x830] sm:$0xff] %v646
        %972 = vst.msk [vmem:[%s381 + $0x838] sm:$0xff] %vm710, %v647
        %973 = vst [vmem:[%s381 + $0x840] sm:$0xff] %v648
        %974 = vst [vmem:[%s381 + $0x848] sm:$0xff] %v649
        %975 = vst.msk [vmem:[%s381 + $0x850] sm:$0xff] %vm710, %v650
        %976 = vst [vmem:[%s381 + $0x858] sm:$0xff] %v651
        %977 = vst [vmem:[%s381 + $0x860] sm:$0xff] %v652
        %978 = vst.msk [vmem:[%s381 + $0x868] sm:$0xff] %vm710, %v653
        %979 = vst [vmem:[%s381 + $0x870] sm:$0xff] %v654
        %980 = vst [vmem:[%s381 + $0x878] sm:$0xff] %v655
        %981 = vst.msk [vmem:[%s381 + $0x880] sm:$0xff] %vm710, %v656
        %982 = vst [vmem:[%s381 + $0x888] sm:$0xff] %v657
        %983 = vst [vmem:[%s381 + $0x890] sm:$0xff] %v658
        %984 = vst.msk [vmem:[%s381 + $0x898] sm:$0xff] %vm710, %v659
        %985 = vst [vmem:[%s381 + $0x8a0] sm:$0xff] %v660
        %986 = vst [vmem:[%s381 + $0x8a8] sm:$0xff] %v661
        %987 = vst.msk [vmem:[%s381 + $0x8b0] sm:$0xff] %vm710, %v662
        %988 = vst [vmem:[%s381 + $0x8b8] sm:$0xff] %v663
        %989 = vst [vmem:[%s381 + $0x8c0] sm:$0xff] %v664
        %990 = vst.msk [vmem:[%s381 + $0x8c8] sm:$0xff] %vm710, %v665
        %991 = vst [vmem:[%s381 + $0x8d0] sm:$0xff] %v666
        %992 = vst [vmem:[%s381 + $0x8d8] sm:$0xff] %v667
        %993 = vst.msk [vmem:[%s381 + $0x8e0] sm:$0xff] %vm710, %v668
        %994 = vst [vmem:[%s381 + $0x8e8] sm:$0xff] %v669
        %995 = vst [vmem:[%s381 + $0x8f0] sm:$0xff] %v670
        %996 = vst.msk [vmem:[%s381 + $0x8f8] sm:$0xff] %vm710, %v671
        %997 = vst [vmem:[%s381 + $0x900] sm:$0xff] %v672
        %998 = vst [vmem:[%s381 + $0x908] sm:$0xff] %v673
        %999 = vst.msk [vmem:[%s381 + $0x910] sm:$0xff] %vm710, %v674
        %1000 = vst [vmem:[%s381 + $0x918] sm:$0xff] %v675
        %1001 = vst [vmem:[%s381 + $0x920] sm:$0xff] %v676
        %1002 = vst.msk [vmem:[%s381 + $0x928] sm:$0xff] %vm710, %v677
        %1003 = vst [vmem:[%s381 + $0x930] sm:$0xff] %v678
        %1004 = vst [vmem:[%s381 + $0x938] sm:$0xff] %v679
        %1005 = vst.msk [vmem:[%s381 + $0x940] sm:$0xff] %vm710, %v680
        %1006 = vst [vmem:[%s381 + $0x948] sm:$0xff] %v681
        %1007 = vst [vmem:[%s381 + $0x950] sm:$0xff] %v682
        %1008 = vst.msk [vmem:[%s381 + $0x958] sm:$0xff] %vm710, %v683
        %1009 = vst [vmem:[%s381 + $0x960] sm:$0xff] %v684
        %1010 = vst [vmem:[%s381 + $0x968] sm:$0xff] %v685
        %1011 = vst.msk [vmem:[%s381 + $0x970] sm:$0xff] %vm710, %v686
        %1012 = vst [vmem:[%s381 + $0x978] sm:$0xff] %v687
        %1013 = vst [vmem:[%s381 + $0x980] sm:$0xff] %v688
        %1014 = vst.msk [vmem:[%s381 + $0x988] sm:$0xff] %vm710, %v689
        %1015 = vst [vmem:[%s381 + $0x990] sm:$0xff] %v690
        %1016 = vst [vmem:[%s381 + $0x998] sm:$0xff] %v691
        %1017 = vst.msk [vmem:[%s381 + $0x9a0] sm:$0xff] %vm710, %v692
        %1018 = vst [vmem:[%s381 + $0x9a8] sm:$0xff] %v693
        %1019 = vst [vmem:[%s381 + $0x9b0] sm:$0xff] %v694
        %1020 = vst.msk [vmem:[%s381 + $0x9b8] sm:$0xff] %vm710, %v695
        %1021 = vst [vmem:[%s381 + $0x9c0] sm:$0xff] %v696
        %1022 = vst [vmem:[%s381 + $0x9c8] sm:$0xff] %v697
        %1023 = vst.msk [vmem:[%s381 + $0x9d0] sm:$0xff] %vm710, %v698
        %1024 = vst [vmem:[%s381 + $0x9d8] sm:$0xff] %v699
        %1025 = vst [vmem:[%s381 + $0x9e0] sm:$0xff] %v700
        %1026 = vst.msk [vmem:[%s381 + $0x9e8] sm:$0xff] %vm710, %v701
        %1027 = vst [vmem:[%s381 + $0x9f0] sm:$0xff] %v702
        %1028 = vst [vmem:[%s381 + $0x9f8] sm:$0xff] %v703
        %1029 = vst.msk [vmem:[%s381 + $0xa00] sm:$0xff] %vm710, %v704
        %1030 = vst [vmem:[%s381 + $0xa08] sm:$0xff] %v705
        %1031 = vst [vmem:[%s381 + $0xa10] sm:$0xff] %v706
        %1032 = vst.msk [vmem:[%s381 + $0xa18] sm:$0xff] %vm710, %v707
        %s1033 = smul.u32 4, %s16
        %s1034 = smul.u32 27, %s17
        %p1035 = scmp.lt.s32.totalorder %s1033, 7
        %s1036 = scalar_select %p1035, %s1033, 7
        %p1037 = scmp.lt.s32.totalorder %s1034, 26
        %s1038 = scalar_select %p1037, %s1034, 26
        %s1039 = smul.addr %s1038, 3
        %s1040 = smul.addr %s1036, 81
        %s1041 = sadd.s32 %s1039, %s1040
        %s1042 = smul.addr %s1041, 8
        %s1043 = scalar_lea.vmem %s1, %s1042
        // Predicated region
        $region55: #{tpu_custom_call.1} parent=49 // pred_check
          %p1044 = pneg %p72
        $region56: #{tpu_custom_call.1} parent=49 // pred_check_branch
          %1046 = sbr.rel (%p1044) target = $region58
        $region57: #{tpu_custom_call.1} parent=49 // pred_region
          %s1047 = smul.u32 4, %s16
          %s1048 = smul.u32 27, %s17
        $region58: #{tpu_custom_call.1} parent=49 // pred_fallthru
          _
      $region50: #{tpu_custom_call.1} parent=5 // pred_fallthru
        _
      %p1049 = scmp.le.s32.totalorder 2, %s7
      // Predicated region
      $region59: #{tpu_custom_call.1} parent=5 // pred_check
        %p1050 = pneg %p1049
      $region60: #{tpu_custom_call.1} parent=5 // pred_check_branch
        %1052 = sbr.rel (%p1050) target = $region62
      $region61: #{tpu_custom_call.1} parent=5 // pred_region
        %s1053 = ssub.s32 %s7, 2
        // Predicated region
        $region63: #{tpu_custom_call.1} parent=61 // pred_check
          %p1054 = pneg %p78
        $region64: #{tpu_custom_call.1} parent=61 // pred_check_branch
          %1056 = sbr.rel (%p1054) target = $region66
        $region65: #{tpu_custom_call.1} parent=61 // pred_region
          %s1057 = smul.u32 4, %s18
          %s1058 = smul.u32 27, %s19
          %p1059 = scmp.lt.s32.totalorder %s1057, 7
          %s1060 = scalar_select %p1059, %s1057, 7
          %p1061 = scmp.lt.s32.totalorder %s1058, 26
          %s1062 = scalar_select %p1061, %s1058, 26
          %s1063 = smul.addr %s1062, 3
          %s1064 = smul.addr %s1060, 81
          %s1065 = sadd.s32 %s1063, %s1064
          %s1066 = smul.addr %s1065, 8
          %s1067 = scalar_lea.vmem %s1, %s1066
        $region66: #{tpu_custom_call.1} parent=61 // pred_fallthru
          _
      $region62: #{tpu_custom_call.1} parent=5 // pred_fallthru
        _
    $region6: #{tpu_custom_call.1} parent=1 // loop_footer
      %s11 = sadd.s32 1, %s7
    $region7: #{tpu_custom_call.1} parent=1 // loop_footer_branch
      %6 = sbr.rel target = $region3
    $region8: #{tpu_custom_call.1} parent=1 // loop_exit
      _

</llo_original>
